<compile_context>
chip_gen: v7x
topology: tpu7x:2x2x1
jax: 0.10.0
libtpu: 0.0.40
codegen_flags: <defaults>
</compile_context>

<pallas_src>
import numpy as np

import jax
import jax.numpy as jnp
from jax import lax
from jax.experimental import pallas as pl
from jax.experimental.pallas import tpu as pltpu


# ---------------------------------------------------------------------------
# Fused kernel: one visual-encoder matmul -> L2-normalize (scale folded into the
# inverse-norm column) -> lane-dense logit matmul.  Everything VMEM-resident.
# ---------------------------------------------------------------------------
def _teacher_fwd_kernel(scale_ref, x_ref, w_ref, txt_t_ref, out_ref):
    # Single fused visual-encoder matmul: patch-extract, mean-pool, patch-embed
    # and projection are all folded into w_ref at init (linear stand-in only).
    feats = jnp.dot(x_ref[...].astype(jnp.bfloat16), w_ref[...],
                    preferred_element_type=jnp.float32)               # [TB, D] f32

    # image_features / image_features.norm(dim=-1, keepdim=True), with
    # logit_scale.exp() folded into the narrow [TB, 1] inverse-norm column
    # (one VPU pass over a column instead of the [TB, 128] output tile).
    # rsqrt + exp go to the EUP slot.  No epsilon: matches torch's x / x.norm(),
    # which also produces non-finite values for an all-zero feature row.
    inv_norm = lax.rsqrt(jnp.sum(feats * feats, axis=-1, keepdims=True))  # [TB, 1]
    img_scaled = feats * (inv_norm * jnp.exp(scale_ref[...]))             # [TB, D] f32

    # Text features arrive pre-normalized, pre-transposed and zero-padded to a
    # lane-dense bf16 [D, 128] slab: single MXU matmul whose f32 result stores
    # directly as an unmasked lane-dense vst (no post-multiply).
    # (For bit-level parity with an fp32 teacher, use precision=HIGHEST instead
    # of bf16 operands.)
    out_ref[...] = jnp.dot(img_scaled.astype(jnp.bfloat16), txt_t_ref[...],
                           preferred_element_type=jnp.float32).astype(out_ref.dtype)


def clip_teacher_forward(logit_scale, x_flat, w_img, text_t_padded):
    """One fused pallas_call for the whole CustomCLIPTeacher forward.

    logit_scale:    [1, 1]  f32   (log of the student logit scale; trainable)
    x_flat:         [B, C*H*W] f32 raw flattened NCHW image
    w_img:          [C*H*W, D] bf16 fused visual-encoder weight
    text_t_padded:  [D, N_pad] bf16 pre-normalized, transposed, lane-padded text
    """
    B, K = x_flat.shape
    D, n_pad = text_t_padded.shape

    # Batch tiling: one block at toy sizes; a multiple-of-8 batch gets tiled and
    # the axis is "parallel" so v7x's 2nd TensorCore takes half the grid.
    TB = 8 if (B % 8 == 0) else B
    grid = (B // TB,)

    cost = pl.CostEstimate(
        flops=2 * B * K * D + 2 * B * D * n_pad,
        transcendentals=B + 1,  # per-row rsqrt + one exp
        bytes_accessed=(x_flat.size * x_flat.dtype.itemsize
                        + w_img.size * w_img.dtype.itemsize
                        + text_t_padded.size * text_t_padded.dtype.itemsize
                        + logit_scale.size * logit_scale.dtype.itemsize
                        + B * n_pad * 4),
    )

    return pl.pallas_call(
        _teacher_fwd_kernel,
        out_shape=jax.ShapeDtypeStruct((B, n_pad), jnp.float32),
        grid=grid,
        in_specs=[
            pl.BlockSpec((1, 1), lambda i: (0, 0)),        # log logit_scale (VMEM scalar tile)
            pl.BlockSpec((TB, K), lambda i: (i, 0)),       # flattened image  [B, C*H*W]
            pl.BlockSpec((K, D), lambda i: (0, 0)),        # fused visual weight (resident)
            pl.BlockSpec((D, n_pad), lambda i: (0, 0)),    # text^T padded      (resident)
        ],
        out_specs=pl.BlockSpec((TB, n_pad), lambda i: (i, 0)),
        compiler_params=pltpu.CompilerParams(dimension_semantics=("parallel",)),
        cost_estimate=cost,
    )(logit_scale, x_flat, w_img, text_t_padded)


# ---------------------------------------------------------------------------
# JAX-side module mirroring CustomCLIPTeacher (deterministic synthetic params).
# ---------------------------------------------------------------------------
class CustomCLIPTeacherPallas:
    LANE = 128  # lane-dense padding target for the logits output

    def __init__(self, key, *, num_classes=8, channels=3, image_size=16,
                 patch=8, dim=32):
        self.channels = channels
        self.image_size = image_size
        self.patch = patch
        self.dim = dim
        self.num_classes = num_classes

        k1, k2, k3 = jax.random.split(key, 3)
        # synthetic image-encoder params (stand-in for teacher_model.visual)
        self.w_patch = 0.02 * jax.random.normal(
            k1, (channels * patch * patch, dim), jnp.float32)
        self.w_proj = 0.02 * jax.random.normal(k2, (dim, dim), jnp.float32)

        # precomputed frozen teacher text features (init_teacher_text_features analogue)
        self.teacher_text_features = jax.random.normal(
            k3, (num_classes, dim), jnp.float32)

        H = W = image_size
        Hb, Wb = H // patch, W // patch
        num_patches = Hb * Wb

        # ---- init-time frozen-parameter folds (computed ONCE) -----------------
        # (1) fuse the two linear stages: w_fused = w_patch @ w_proj
        # (2) scatter w_fused rows to channel-major NCHW positions and fold in the
        #     1/num_patches mean-pool factor, so the kernel consumes the raw
        #     flattened image with a single [B, C*H*W] @ [C*H*W, D] matmul.
        # (3) store MXU operands in bf16 (accumulation / normalization stay f32).
        # Folds (1)-(2) are only valid for the linear stand-in encoder (see TODO).
        w_fused = jnp.dot(self.w_patch, self.w_proj)                  # [C*P*P, D]
        w_r = w_fused.reshape(channels, patch, patch, dim)
        w_img = jnp.broadcast_to(
            w_r[:, None, :, None, :, :],
            (channels, Hb, patch, Wb, patch, dim))
        self.w_img = (w_img.reshape(channels * H * W, dim)
                      / num_patches).astype(jnp.bfloat16)             # [C*H*W, D] bf16

        # Frozen text buffer: L2-normalize, transpose to [D, N], zero-pad the class
        # axis to 128 lanes (padded columns give exactly-zero logits, sliced away
        # host-side), cast to bf16.
        txt_n = self.teacher_text_features / jnp.linalg.norm(
            self.teacher_text_features, axis=-1, keepdims=True)
        n_pad = ((num_classes + self.LANE - 1) // self.LANE) * self.LANE
        self.num_classes_padded = n_pad
        self.text_features_t = (
            jnp.zeros((dim, n_pad), jnp.float32)
            .at[:, :num_classes].set(txt_n.T)
            .astype(jnp.bfloat16))

        # Trainable student logit-scale (log of 1/temperature, as in CLIP): exp()
        # stays in-kernel per forward (matches PyTorch semantics); it is folded into
        # the per-row inverse-norm column rather than the output tile.
        self.logit_scale = jnp.full((1, 1), jnp.log(1.0 / 0.07), jnp.float32)

    def __call__(self, image):
        B = image.shape[0]
        # Raw NCHW flatten -- a free view for contiguous input; the patch transpose
        # and mean-pool were folded into self.w_img at init.
        x_flat = image.reshape(B, -1).astype(jnp.float32)
        logits_padded = clip_teacher_forward(
            self.logit_scale, x_flat, self.w_img, self.text_features_t)
        return logits_padded[:, : self.num_classes]


if __name__ == "__main__":
    key = jax.random.PRNGKey(0)
    k_model, k_img = jax.random.split(key)

    model = CustomCLIPTeacherPallas(
        k_model, num_classes=8, channels=3, image_size=16, patch=8, dim=32)

    # image: [batch=2, channels=3, H=16, W=16], NCHW like PyTorch
    image = jax.random.normal(k_img, (2, 3, 16, 16), jnp.float32)

    # jit the whole forward so the flatten / output slice fuse into one XLA program
    # around the single Pallas custom call.
    fwd = jax.jit(model.__call__)
    logits = fwd(image)
    jax.block_until_ready(logits)

    assert logits.shape == (2, 8), logits.shape
    assert logits.dtype == jnp.float32
    assert bool(jnp.all(jnp.isfinite(logits)))

    # Pure-numpy float64 reference on the UN-folded path (per-patch embed, then pool,
    # then projection) as a structural sanity check.  Tolerance accounts for bf16 MXU
    # operands but still catches wrong transposes / missing scale / broken folds
    # (which produce O(1-10) errors).
    img_np = np.asarray(image, dtype=np.float64)
    B, C, H, W = img_np.shape
    P = model.patch
    xp = img_np.reshape(B, C, H // P, P, W // P, P).transpose(0, 2, 4, 1, 3, 5)
    xp = xp.reshape(B, (H // P) * (W // P), C * P * P)
    emb = np.einsum("bpk,kd->bpd", xp, np.asarray(model.w_patch, np.float64)).mean(axis=1)
    feats = emb @ np.asarray(model.w_proj, np.float64)
    img_n = feats / np.linalg.norm(feats, axis=-1, keepdims=True)
    txt = np.asarray(model.teacher_text_features, np.float64)
    txt_n = txt / np.linalg.norm(txt, axis=-1, keepdims=True)
    ref = np.exp(float(model.logit_scale[0, 0])) * (img_n @ txt_n.T)
    max_err = float(np.max(np.abs(np.asarray(logits, np.float64) - ref)))
    assert max_err < 0.5, f"structural mismatch vs reference, max abs err {max_err}"

    print("KERNEL_OK")
</pallas_src>

<mosaic_0001>
module attributes {stable_mosaic.version = 11 : i64} {
  func.func @_teacher_fwd_kernel(%arg0: i32, %arg1: memref<1x1xf32, #tpu.memory_space<vmem>>, %arg2: memref<2x768xf32, #tpu.memory_space<vmem>>, %arg3: memref<768x32xbf16, #tpu.memory_space<vmem>>, %arg4: memref<32x128xbf16, #tpu.memory_space<vmem>>, %arg5: memref<2x128xf32, #tpu.memory_space<vmem>>) attributes {dimension_semantics = [#tpu.dimension_semantics<parallel>], iteration_bounds = array<i64: 1>, scalar_prefetch = 0 : i64, scratch_operands = 0 : i64, tpu.core_type = #tpu.core_type<tc>, window_params = [{pipeline_mode = #tpu.pipeline_mode<synchronous>, transform_indices = @transform_0, window_bounds = array<i64: 1, 1>}, {transform_indices = @transform_1, window_bounds = array<i64: 2, 768>}, {pipeline_mode = #tpu.pipeline_mode<synchronous>, transform_indices = @transform_2, window_bounds = array<i64: 768, 32>}, {pipeline_mode = #tpu.pipeline_mode<synchronous>, transform_indices = @transform_3, window_bounds = array<i64: 32, 128>}, {transform_indices = @transform_4, window_bounds = array<i64: 2, 128>}]} {
    %c0 = arith.constant 0 : index
    %c0_0 = arith.constant 0 : index
    %0 = vector.load %arg2[%c0, %c0_0] : memref<2x768xf32, #tpu.memory_space<vmem>>, vector<2x768xf32>
    %1 = arith.truncf %0 : vector<2x768xf32> to vector<2x768xbf16>
    %c0_1 = arith.constant 0 : index
    %c0_2 = arith.constant 0 : index
    %2 = vector.load %arg3[%c0_1, %c0_2] : memref<768x32xbf16, #tpu.memory_space<vmem>>, vector<768x32xbf16>
    %cst = arith.constant dense<0.000000e+00> : vector<2x32xf32>
    %3 = tpu.matmul %1, %2, %cst {dimension_numbers = #tpu.dot_dimension_numbers<[1], [0], [0], [1], [0, 0, 1, 1], [], []>} : vector<2x768xbf16>, vector<768x32xbf16>, vector<2x32xf32> -> vector<2x32xf32>
    %4 = arith.mulf %3, %3 : vector<2x32xf32>
    %cst_3 = arith.constant dense<0.000000e+00> : vector<2xf32>
    %5 = vector.multi_reduction <add>, %4, %cst_3 [1] : vector<2x32xf32> to vector<2xf32>
    %6 = vector.shape_cast %5 : vector<2xf32> to vector<2x1xf32>
    %7 = math.rsqrt %6 : vector<2x1xf32>
    %c0_4 = arith.constant 0 : index
    %c0_5 = arith.constant 0 : index
    %8 = vector.load %arg1[%c0_4, %c0_5] : memref<1x1xf32, #tpu.memory_space<vmem>>, vector<1x1xf32>
    %9 = math.exp %8 : vector<1x1xf32>
    %10 = vector.broadcast %9 : vector<1x1xf32> to vector<2x1xf32>
    %11 = arith.mulf %7, %10 : vector<2x1xf32>
    %12 = vector.broadcast %11 : vector<2x1xf32> to vector<2x32xf32>
    %13 = arith.mulf %3, %12 : vector<2x32xf32>
    %14 = arith.truncf %13 : vector<2x32xf32> to vector<2x32xbf16>
    %c0_6 = arith.constant 0 : index
    %c0_7 = arith.constant 0 : index
    %15 = vector.load %arg4[%c0_6, %c0_7] : memref<32x128xbf16, #tpu.memory_space<vmem>>, vector<32x128xbf16>
    %cst_8 = arith.constant dense<0.000000e+00> : vector<2x128xf32>
    %16 = tpu.matmul %14, %15, %cst_8 {dimension_numbers = #tpu.dot_dimension_numbers<[1], [0], [0], [1], [0, 0, 1, 1], [], []>} : vector<2x32xbf16>, vector<32x128xbf16>, vector<2x128xf32> -> vector<2x128xf32>
    %c0_9 = arith.constant 0 : index
    %c0_10 = arith.constant 0 : index
    %17 = vector.load %arg5[%c0_9, %c0_10] : memref<2x128xf32, #tpu.memory_space<vmem>>, vector<2x128xf32>
    tpu.vector_store %arg5[%c0_9, %c0_10], %16 {strides = array<i32>} : memref<2x128xf32, #tpu.memory_space<vmem>>, vector<2x128xf32>,
    return
  }
  func.func @transform_0(%arg0: i32) -> (i32, i32) {
    %c0_i32 = arith.constant 0 : i32
    %c0_i32_0 = arith.constant 0 : i32
    %c0_i32_1 = arith.constant 0 : i32
    return %c0_i32, %c0_i32_0 : i32, i32
  }
  func.func @transform_1(%arg0: i32) -> (i32, i32) {
    %c0_i32 = arith.constant 0 : i32
    %c0_i32_0 = arith.constant 0 : i32
    return %arg0, %c0_i32 : i32, i32
  }
  func.func @transform_2(%arg0: i32) -> (i32, i32) {
    %c0_i32 = arith.constant 0 : i32
    %c0_i32_0 = arith.constant 0 : i32
    %c0_i32_1 = arith.constant 0 : i32
    return %c0_i32, %c0_i32_0 : i32, i32
  }
  func.func @transform_3(%arg0: i32) -> (i32, i32) {
    %c0_i32 = arith.constant 0 : i32
    %c0_i32_0 = arith.constant 0 : i32
    %c0_i32_1 = arith.constant 0 : i32
    return %c0_i32, %c0_i32_0 : i32, i32
  }
  func.func @transform_4(%arg0: i32) -> (i32, i32) {
    %c0_i32 = arith.constant 0 : i32
    %c0_i32_0 = arith.constant 0 : i32
    return %arg0, %c0_i32 : i32, i32
  }
}

</mosaic_0001>

<llo_original>
// kernel: a_call__.1
$region0: #{a_call__.1}
  #allocation0 [shape = 'u32[]', space=smem, size = 0x4, offset = 0x4, fixed_abs, tag = 'smem constant byte address 0x4 - core index']
  #allocation1 [shape = 'u32[144,128]{1,0:T(1,128)}', space=vmem, size = 0x12000, scoped, tag = 'internal scratch']
  #allocation2 [shape = 'f32[1,1]{1,0:T(1,128)S(1)}', space=vmem, size = 0x200, scoped, tag = 'scoped memory for a_call__.1']
  %s0 = inlined_call_operand.<no memory space> [shape: f32[1,1], index: 0, kind: input, shape index: {}]
  %s1 = inlined_call_operand.vmem [shape: f32[2,768], index: 1, kind: input, shape index: {}]
  %s2 = inlined_call_operand.hbm [shape: bf16[768,32], index: 2, kind: input, shape index: {}]
  %s3 = inlined_call_operand.vmem [shape: bf16[32,128], index: 3, kind: input, shape index: {}]
  %s4 = inlined_call_operand.hbm [shape: f32[2,128], index: 4, kind: output, shape index: {}]
  %s5 = sld [smem:[#allocation0]]
  $region30: #{a_call__.1} parent=0
    _
  %s7 = ssub.s32 1, %s5
  %s8 = scalar_select 0, %s7, %s5
  %v9 = vstv %s0
  %10 = vst [vmem:[#allocation2] sm:$0x1] %v9
  $region1: #{a_call__.1} parent=0
    #allocation3 [shape = 'u8[196608]{0}', space=vmem, size = 0x30000, scoped, tag = 'input window, operand 2, single buffered']
    #allocation4 [shape = 's32[1]{0}', space=sflag, size = 0x4, scoped, tag = 'scoped memory for a_call__.1']
    #allocation5 [shape = 's32[1]{0}', space=sflag, size = 0x4, scoped, tag = 'scoped memory for a_call__.1']
    #allocation6 [shape = 'u8[1024]{0}', space=vmem, size = 0x400, scoped, tag = 'output window, operand 0, single buffered']
    %11 = vsyncpa [#allocation4], 0
    %12 = vsyncpa [#allocation5], 0
    // Predicated region
    $region2: #{a_call__.1} parent=1 // pred_check
      _
    $region3: #{a_call__.1} parent=1 // pred_check_branch
      %14 = sbr.rel (0) target = $region5
    $region4: #{a_call__.1} parent=1 // pred_region
      _
    $region5: #{a_call__.1} parent=1 // pred_fallthru
      _
    // Predicated region
    $region6: #{a_call__.1} parent=1 // pred_check
      _
    $region7: #{a_call__.1} parent=1 // pred_check_branch
      %16 = sbr.rel (0) target = $region9
    $region8: #{a_call__.1} parent=1 // pred_region
      _
    $region9: #{a_call__.1} parent=1 // pred_fallthru
      _
    // Predicated region
    $region10: #{a_call__.1} parent=1 // pred_check
      _
    $region11: #{a_call__.1} parent=1 // pred_check_branch
      %18 = sbr.rel (0) target = $region13
    $region12: #{a_call__.1} parent=1 // pred_region
      %s20 = ssub.s32 6144, 6144
      %21 = vsyncadd [#allocation4], %s20
      %s22 = sshll.u32 [#allocation3], 4
      %s23 = int_to_ptr.vmem [resolvable:$true] %s22
      %28 = dma.hbm_to_vmem [thread:$0]  %s2, 6144, %s23, [#allocation4], 64, 64, 4
    $region13: #{a_call__.1} parent=1 // pred_fallthru
      _
    // Predicated region
    $region14: #{a_call__.1} parent=1 // pred_check
      _
    $region15: #{a_call__.1} parent=1 // pred_check_branch
      %30 = sbr.rel (0) target = $region17
    $region16: #{a_call__.1} parent=1 // pred_region
      _
    $region17: #{a_call__.1} parent=1 // pred_fallthru
      _
    // Predicated region
    $region18: #{a_call__.1} parent=1 // pred_check
      _
    $region19: #{a_call__.1} parent=1 // pred_check_branch
      %32 = sbr.rel (0) target = $region21
    $region20: #{a_call__.1} parent=1 // pred_region
      %33 = dma.done [#allocation4], 6144
    $region21: #{a_call__.1} parent=1 // pred_fallthru
      _
    %v35 = vld [vmem:[%s1] sm:$0xff]
    %v36 = vld [vmem:[%s1 + $0x8] sm:$0xf]
    %v39 = vcombine.high %v35, %v35
    %v41 = vunpack.c.l.s4 1983009808
    %v42 = vunpack.c.0.s8 %v41
    %v43 = vlaneseq
    %v44 = vshrl.u32 %v43, 7
    %v45 = vsub.s32 %v42, %v44
    %v46 = vrot.slane %v35, %v45
    %v48 = vunpack.c.l.s4 1983009808
    %v49 = vunpack.c.0.s8 %v48
    %v50 = vlaneseq
    %v51 = vshrl.u32 %v50, 7
    %v52 = vsub.s32 %v49, %v51
    %v53 = vrot.slane %v39, %v52
    %v54 = vcombine.high %v46, %v46
    %v55 = vcombine.high %v53, %v53
    %v57 = vunpack.c.l.s4 1983009808
    %v58 = vunpack.c.0.s8 %v57
    %v59 = vlaneseq
    %v60 = vshrl.u32 %v59, 7
    %v61 = vsub.s32 %v58, %v60
    %v62 = vrot.slane %v36, %v61
    %v63 = vcombine.high %v62, %v62
    %v70 = vpack.c.bf16 %v46, %v46
    %v71 = vpack.c.bf16 %v54, %v54
    %v72 = vpack.c.bf16 %v53, %v53
    %v73 = vpack.c.bf16 %v55, %v55
    %v74 = vpack.c.bf16 %v62, %v62
    %v75 = vpack.c.bf16 %v63, %v63
    %v76 = vld [vmem:[#allocation3] sm:$0xf]
    %v77 = vld [vmem:[#allocation3 + $0x4] sm:$0xf]
    %v78 = vld [vmem:[#allocation3 + $0x8] sm:$0xf]
    %v79 = vld [vmem:[#allocation3 + $0xc] sm:$0xf]
    %v80 = vld [vmem:[#allocation3 + $0x10] sm:$0xf]
    %v81 = vld [vmem:[#allocation3 + $0x14] sm:$0xf]
    %v82 = vld [vmem:[#allocation3 + $0x18] sm:$0xf]
    %v83 = vld [vmem:[#allocation3 + $0x1c] sm:$0xf]
    %v84 = vld [vmem:[#allocation3 + $0x20] sm:$0xf]
    %v85 = vld [vmem:[#allocation3 + $0x24] sm:$0xf]
    %v86 = vld [vmem:[#allocation3 + $0x28] sm:$0xf]
    %v87 = vld [vmem:[#allocation3 + $0x2c] sm:$0xf]
    %v88 = vld [vmem:[#allocation3 + $0x30] sm:$0xf]
    %v89 = vld [vmem:[#allocation3 + $0x34] sm:$0xf]
    %v90 = vld [vmem:[#allocation3 + $0x38] sm:$0xf]
    %v91 = vld [vmem:[#allocation3 + $0x3c] sm:$0xf]
    %v92 = vld [vmem:[#allocation3 + $0x40] sm:$0xf]
    %v93 = vld [vmem:[#allocation3 + $0x44] sm:$0xf]
    %v94 = vld [vmem:[#allocation3 + $0x48] sm:$0xf]
    %v95 = vld [vmem:[#allocation3 + $0x4c] sm:$0xf]
    %v96 = vld [vmem:[#allocation3 + $0x50] sm:$0xf]
    %v97 = vld [vmem:[#allocation3 + $0x54] sm:$0xf]
    %v98 = vld [vmem:[#allocation3 + $0x58] sm:$0xf]
    %v99 = vld [vmem:[#allocation3 + $0x5c] sm:$0xf]
    %v100 = vld [vmem:[#allocation3 + $0x60] sm:$0xf]
    %v101 = vld [vmem:[#allocation3 + $0x64] sm:$0xf]
    %v102 = vld [vmem:[#allocation3 + $0x68] sm:$0xf]
    %v103 = vld [vmem:[#allocation3 + $0x6c] sm:$0xf]
    %v104 = vld [vmem:[#allocation3 + $0x70] sm:$0xf]
    %v105 = vld [vmem:[#allocation3 + $0x74] sm:$0xf]
    %v106 = vld [vmem:[#allocation3 + $0x78] sm:$0xf]
    %v107 = vld [vmem:[#allocation3 + $0x7c] sm:$0xf]
    %v108 = vld [vmem:[#allocation3 + $0x80] sm:$0xf]
    %v109 = vld [vmem:[#allocation3 + $0x84] sm:$0xf]
    %v110 = vld [vmem:[#allocation3 + $0x88] sm:$0xf]
    %v111 = vld [vmem:[#allocation3 + $0x8c] sm:$0xf]
    %v112 = vld [vmem:[#allocation3 + $0x90] sm:$0xf]
    %v113 = vld [vmem:[#allocation3 + $0x94] sm:$0xf]
    %v114 = vld [vmem:[#allocation3 + $0x98] sm:$0xf]
    %v115 = vld [vmem:[#allocation3 + $0x9c] sm:$0xf]
    %v116 = vld [vmem:[#allocation3 + $0xa0] sm:$0xf]
    %v117 = vld [vmem:[#allocation3 + $0xa4] sm:$0xf]
    %v118 = vld [vmem:[#allocation3 + $0xa8] sm:$0xf]
    %v119 = vld [vmem:[#allocation3 + $0xac] sm:$0xf]
    %v120 = vld [vmem:[#allocation3 + $0xb0] sm:$0xf]
    %v121 = vld [vmem:[#allocation3 + $0xb4] sm:$0xf]
    %v122 = vld [vmem:[#allocation3 + $0xb8] sm:$0xf]
    %v123 = vld [vmem:[#allocation3 + $0xbc] sm:$0xf]
    %v124 = vld [vmem:[#allocation3 + $0xc0] sm:$0xf]
    %v125 = vld [vmem:[#allocation3 + $0xc4] sm:$0xf]
    %v126 = vld [vmem:[#allocation3 + $0xc8] sm:$0xf]
    %v127 = vld [vmem:[#allocation3 + $0xcc] sm:$0xf]
    %v128 = vld [vmem:[#allocation3 + $0xd0] sm:$0xf]
    %v129 = vld [vmem:[#allocation3 + $0xd4] sm:$0xf]
    %v130 = vld [vmem:[#allocation3 + $0xd8] sm:$0xf]
    %v131 = vld [vmem:[#allocation3 + $0xdc] sm:$0xf]
    %v132 = vld [vmem:[#allocation3 + $0xe0] sm:$0xf]
    %v133 = vld [vmem:[#allocation3 + $0xe4] sm:$0xf]
    %v134 = vld [vmem:[#allocation3 + $0xe8] sm:$0xf]
    %v135 = vld [vmem:[#allocation3 + $0xec] sm:$0xf]
    %v136 = vld [vmem:[#allocation3 + $0xf0] sm:$0xf]
    %v137 = vld [vmem:[#allocation3 + $0xf4] sm:$0xf]
    %v138 = vld [vmem:[#allocation3 + $0xf8] sm:$0xf]
    %v139 = vld [vmem:[#allocation3 + $0xfc] sm:$0xf]
    %v140 = vld [vmem:[#allocation3 + $0x100] sm:$0xf]
    %v141 = vld [vmem:[#allocation3 + $0x104] sm:$0xf]
    %v142 = vld [vmem:[#allocation3 + $0x108] sm:$0xf]
    %v143 = vld [vmem:[#allocation3 + $0x10c] sm:$0xf]
    %v144 = vld [vmem:[#allocation3 + $0x110] sm:$0xf]
    %v145 = vld [vmem:[#allocation3 + $0x114] sm:$0xf]
    %v146 = vld [vmem:[#allocation3 + $0x118] sm:$0xf]
    %v147 = vld [vmem:[#allocation3 + $0x11c] sm:$0xf]
    %v148 = vld [vmem:[#allocation3 + $0x120] sm:$0xf]
    %v149 = vld [vmem:[#allocation3 + $0x124] sm:$0xf]
    %v150 = vld [vmem:[#allocation3 + $0x128] sm:$0xf]
    %v151 = vld [vmem:[#allocation3 + $0x12c] sm:$0xf]
    %v152 = vld [vmem:[#allocation3 + $0x130] sm:$0xf]
    %v153 = vld [vmem:[#allocation3 + $0x134] sm:$0xf]
    %v154 = vld [vmem:[#allocation3 + $0x138] sm:$0xf]
    %v155 = vld [vmem:[#allocation3 + $0x13c] sm:$0xf]
    %v156 = vld [vmem:[#allocation3 + $0x140] sm:$0xf]
    %v157 = vld [vmem:[#allocation3 + $0x144] sm:$0xf]
    %v158 = vld [vmem:[#allocation3 + $0x148] sm:$0xf]
    %v159 = vld [vmem:[#allocation3 + $0x14c] sm:$0xf]
    %v160 = vld [vmem:[#allocation3 + $0x150] sm:$0xf]
    %v161 = vld [vmem:[#allocation3 + $0x154] sm:$0xf]
    %v162 = vld [vmem:[#allocation3 + $0x158] sm:$0xf]
    %v163 = vld [vmem:[#allocation3 + $0x15c] sm:$0xf]
    %v164 = vld [vmem:[#allocation3 + $0x160] sm:$0xf]
    %v165 = vld [vmem:[#allocation3 + $0x164] sm:$0xf]
    %v166 = vld [vmem:[#allocation3 + $0x168] sm:$0xf]
    %v167 = vld [vmem:[#allocation3 + $0x16c] sm:$0xf]
    %v168 = vld [vmem:[#allocation3 + $0x170] sm:$0xf]
    %v169 = vld [vmem:[#allocation3 + $0x174] sm:$0xf]
    %v170 = vld [vmem:[#allocation3 + $0x178] sm:$0xf]
    %v171 = vld [vmem:[#allocation3 + $0x17c] sm:$0xf]
    %v268 = vunpack.c.l.b16 %v76
    %v269 = vunpack.c.l.b16 %v77
    %v270 = vunpack.c.l.b16 %v78
    %v271 = vunpack.c.l.b16 %v79
    %v272 = vunpack.c.l.b16 %v80
    %v273 = vunpack.c.l.b16 %v81
    %v274 = vunpack.c.l.b16 %v82
    %v275 = vunpack.c.l.b16 %v83
    %v276 = vunpack.c.l.b16 %v84
    %v277 = vunpack.c.l.b16 %v85
    %v278 = vunpack.c.l.b16 %v86
    %v279 = vunpack.c.l.b16 %v87
    %v280 = vunpack.c.l.b16 %v88
    %v281 = vunpack.c.l.b16 %v89
    %v282 = vunpack.c.l.b16 %v90
    %v283 = vunpack.c.l.b16 %v91
    %v284 = vunpack.c.l.b16 %v92
    %v285 = vunpack.c.l.b16 %v93
    %v286 = vunpack.c.l.b16 %v94
    %v287 = vunpack.c.l.b16 %v95
    %v288 = vunpack.c.l.b16 %v96
    %v289 = vunpack.c.l.b16 %v97
    %v290 = vunpack.c.l.b16 %v98
    %v291 = vunpack.c.l.b16 %v99
    %v292 = vunpack.c.l.b16 %v100
    %v293 = vunpack.c.l.b16 %v101
    %v294 = vunpack.c.l.b16 %v102
    %v295 = vunpack.c.l.b16 %v103
    %v296 = vunpack.c.l.b16 %v104
    %v297 = vunpack.c.l.b16 %v105
    %v298 = vunpack.c.l.b16 %v106
    %v299 = vunpack.c.l.b16 %v107
    %v300 = vunpack.c.l.b16 %v108
    %v301 = vunpack.c.l.b16 %v109
    %v302 = vunpack.c.l.b16 %v110
    %v303 = vunpack.c.l.b16 %v111
    %v304 = vunpack.c.l.b16 %v112
    %v305 = vunpack.c.l.b16 %v113
    %v306 = vunpack.c.l.b16 %v114
    %v307 = vunpack.c.l.b16 %v115
    %v308 = vunpack.c.l.b16 %v116
    %v309 = vunpack.c.l.b16 %v117
    %v310 = vunpack.c.l.b16 %v118
    %v311 = vunpack.c.l.b16 %v119
    %v312 = vunpack.c.l.b16 %v120
    %v313 = vunpack.c.l.b16 %v121
    %v314 = vunpack.c.l.b16 %v122
    %v315 = vunpack.c.l.b16 %v123
    %v316 = vunpack.c.l.b16 %v124
    %v317 = vunpack.c.l.b16 %v125
    %v318 = vunpack.c.l.b16 %v126
    %v319 = vunpack.c.l.b16 %v127
    %v320 = vunpack.c.l.b16 %v128
    %v321 = vunpack.c.l.b16 %v129
    %v322 = vunpack.c.l.b16 %v130
    %v323 = vunpack.c.l.b16 %v131
    %v324 = vunpack.c.l.b16 %v132
    %v325 = vunpack.c.l.b16 %v133
    %v326 = vunpack.c.l.b16 %v134
    %v327 = vunpack.c.l.b16 %v135
    %v328 = vunpack.c.l.b16 %v136
    %v329 = vunpack.c.l.b16 %v137
    %v330 = vunpack.c.l.b16 %v138
    %v331 = vunpack.c.l.b16 %v139
    %v332 = vunpack.c.l.b16 %v140
    %v333 = vunpack.c.l.b16 %v141
    %v334 = vunpack.c.l.b16 %v142
    %v335 = vunpack.c.l.b16 %v143
    %v336 = vunpack.c.l.b16 %v144
    %v337 = vunpack.c.l.b16 %v145
    %v338 = vunpack.c.l.b16 %v146
    %v339 = vunpack.c.l.b16 %v147
    %v340 = vunpack.c.l.b16 %v148
    %v341 = vunpack.c.l.b16 %v149
    %v342 = vunpack.c.l.b16 %v150
    %v343 = vunpack.c.l.b16 %v151
    %v344 = vunpack.c.l.b16 %v152
    %v345 = vunpack.c.l.b16 %v153
    %v346 = vunpack.c.l.b16 %v154
    %v347 = vunpack.c.l.b16 %v155
    %v348 = vunpack.c.l.b16 %v156
    %v349 = vunpack.c.l.b16 %v157
    %v350 = vunpack.c.l.b16 %v158
    %v351 = vunpack.c.l.b16 %v159
    %v352 = vunpack.c.l.b16 %v160
    %v353 = vunpack.c.l.b16 %v161
    %v354 = vunpack.c.l.b16 %v162
    %v355 = vunpack.c.l.b16 %v163
    %v356 = vunpack.c.l.b16 %v164
    %v357 = vunpack.c.l.b16 %v165
    %v358 = vunpack.c.l.b16 %v166
    %v359 = vunpack.c.l.b16 %v167
    %v360 = vunpack.c.l.b16 %v168
    %v361 = vunpack.c.l.b16 %v169
    %v362 = vunpack.c.l.b16 %v170
    %v363 = vunpack.c.l.b16 %v171
    %v364 = vpack.c.b16 %v269, %v268
    %v365 = vpack.c.b16 %v271, %v270
    %v366 = vpack.c.b16 %v273, %v272
    %v367 = vpack.c.b16 %v275, %v274
    %v368 = vpack.c.b16 %v277, %v276
    %v369 = vpack.c.b16 %v279, %v278
    %v370 = vpack.c.b16 %v281, %v280
    %v371 = vpack.c.b16 %v283, %v282
    %v372 = vpack.c.b16 %v285, %v284
    %v373 = vpack.c.b16 %v287, %v286
    %v374 = vpack.c.b16 %v289, %v288
    %v375 = vpack.c.b16 %v291, %v290
    %v376 = vpack.c.b16 %v293, %v292
    %v377 = vpack.c.b16 %v295, %v294
    %v378 = vpack.c.b16 %v297, %v296
    %v379 = vpack.c.b16 %v299, %v298
    %v380 = vpack.c.b16 %v301, %v300
    %v381 = vpack.c.b16 %v303, %v302
    %v382 = vpack.c.b16 %v305, %v304
    %v383 = vpack.c.b16 %v307, %v306
    %v384 = vpack.c.b16 %v309, %v308
    %v385 = vpack.c.b16 %v311, %v310
    %v386 = vpack.c.b16 %v313, %v312
    %v387 = vpack.c.b16 %v315, %v314
    %v388 = vpack.c.b16 %v317, %v316
    %v389 = vpack.c.b16 %v319, %v318
    %v390 = vpack.c.b16 %v321, %v320
    %v391 = vpack.c.b16 %v323, %v322
    %v392 = vpack.c.b16 %v325, %v324
    %v393 = vpack.c.b16 %v327, %v326
    %v394 = vpack.c.b16 %v329, %v328
    %v395 = vpack.c.b16 %v331, %v330
    %v396 = vpack.c.b16 %v333, %v332
    %v397 = vpack.c.b16 %v335, %v334
    %v398 = vpack.c.b16 %v337, %v336
    %v399 = vpack.c.b16 %v339, %v338
    %v400 = vpack.c.b16 %v341, %v340
    %v401 = vpack.c.b16 %v343, %v342
    %v402 = vpack.c.b16 %v345, %v344
    %v403 = vpack.c.b16 %v347, %v346
    %v404 = vpack.c.b16 %v349, %v348
    %v405 = vpack.c.b16 %v351, %v350
    %v406 = vpack.c.b16 %v353, %v352
    %v407 = vpack.c.b16 %v355, %v354
    %v408 = vpack.c.b16 %v357, %v356
    %v409 = vpack.c.b16 %v359, %v358
    %v410 = vpack.c.b16 %v361, %v360
    %v411 = vpack.c.b16 %v363, %v362
    %460 = vmatprep.subr.bf16.mxu0 0
    %461 = vmatpush1.bf16.msra.mxu0 %v364
    %462 = vmatprep.subr.bf16.mxu0 0
    %463 = vmatpush1.bf16.msra.mxu0 %v365
    %464 = vmatprep.subr.bf16.mxu0 0
    %465 = vmatpush1.bf16.msra.mxu0 %v366
    %466 = vmatprep.subr.bf16.mxu0 0
    %467 = vmatpush1.bf16.msra.mxu0 %v367
    %468 = vmatprep.subr.bf16.mxu0 0
    %469 = vmatpush1.bf16.msra.mxu0 %v368
    %470 = vmatprep.subr.bf16.mxu0 0
    %471 = vmatpush1.bf16.msra.mxu0 %v369
    %472 = vmatprep.subr.bf16.mxu0 0
    %473 = vmatpush1.bf16.msra.mxu0 %v370
    %474 = vmatprep.subr.bf16.mxu0 0
    %475 = vmatpush1.bf16.msra.mxu0 %v371
    %476 = vmatprep.subr.bf16.mxu0 0
    %477 = vmatpush1.bf16.msra.mxu0 %v372
    %478 = vmatprep.subr.bf16.mxu0 0
    %479 = vmatpush1.bf16.msra.mxu0 %v373
    %480 = vmatprep.subr.bf16.mxu0 0
    %481 = vmatpush1.bf16.msra.mxu0 %v374
    %482 = vmatprep.subr.bf16.mxu0 0
    %483 = vmatpush1.bf16.msra.mxu0 %v375
    %484 = vmatprep.subr.bf16.mxu0 0
    %485 = vmatpush1.bf16.msra.mxu0 %v376
    %486 = vmatprep.subr.bf16.mxu0 0
    %487 = vmatpush1.bf16.msra.mxu0 %v377
    %488 = vmatprep.subr.bf16.mxu0 0
    %489 = vmatpush1.bf16.msra.mxu0 %v378
    %490 = vmatprep.subr.bf16.mxu0 0
    %491 = vmatpush1.bf16.msra.mxu0 %v379
    %492 = vmatprep.mubr.bf16.mxu0 %v71
    %493 = vmatmul.mubr.bf16.gmra.mrb[0].mxu0 %v70
    %v494 = vpop.f32.mrb[0].mxu0
    %v495 = vadd.f32 0.0, %v494
    %v496 = vpop.f32.mrb[0].mxu0
    %v497 = vpop.f32.mrb[0].mxu0
    %v498 = vpop.f32.mrb[0].mxu0
    %499 = vdwg.mxu0
    %500 = vmatprep.subr.bf16.mxu0 0
    %501 = vmatpush1.bf16.msra.mxu0 %v380
    %502 = vmatprep.subr.bf16.mxu0 0
    %503 = vmatpush1.bf16.msra.mxu0 %v381
    %504 = vmatprep.subr.bf16.mxu0 0
    %505 = vmatpush1.bf16.msra.mxu0 %v382
    %506 = vmatprep.subr.bf16.mxu0 0
    %507 = vmatpush1.bf16.msra.mxu0 %v383
    %508 = vmatprep.subr.bf16.mxu0 0
    %509 = vmatpush1.bf16.msra.mxu0 %v384
    %510 = vmatprep.subr.bf16.mxu0 0
    %511 = vmatpush1.bf16.msra.mxu0 %v385
    %512 = vmatprep.subr.bf16.mxu0 0
    %513 = vmatpush1.bf16.msra.mxu0 %v386
    %514 = vmatprep.subr.bf16.mxu0 0
    %515 = vmatpush1.bf16.msra.mxu0 %v387
    %516 = vmatprep.subr.bf16.mxu0 0
    %517 = vmatpush1.bf16.msra.mxu0 %v388
    %518 = vmatprep.subr.bf16.mxu0 0
    %519 = vmatpush1.bf16.msra.mxu0 %v389
    %520 = vmatprep.subr.bf16.mxu0 0
    %521 = vmatpush1.bf16.msra.mxu0 %v390
    %522 = vmatprep.subr.bf16.mxu0 0
    %523 = vmatpush1.bf16.msra.mxu0 %v391
    %524 = vmatprep.subr.bf16.mxu0 0
    %525 = vmatpush1.bf16.msra.mxu0 %v392
    %526 = vmatprep.subr.bf16.mxu0 0
    %527 = vmatpush1.bf16.msra.mxu0 %v393
    %528 = vmatprep.subr.bf16.mxu0 0
    %529 = vmatpush1.bf16.msra.mxu0 %v394
    %530 = vmatprep.subr.bf16.mxu0 0
    %531 = vmatpush1.bf16.msra.mxu0 %v395
    %532 = vmatprep.mubr.bf16.mxu0 %v73
    %533 = vmatmul.mubr.bf16.gmra.mrb[0].mxu0 %v72
    %v534 = vpop.f32.mrb[0].mxu0
    %v535 = vadd.f32 %v495, %v534
    %v536 = vpop.f32.mrb[0].mxu0
    %v537 = vpop.f32.mrb[0].mxu0
    %v538 = vpop.f32.mrb[0].mxu0
    %539 = vdwg.mxu0
    %540 = vmatprep.subr.bf16.mxu0 0
    %541 = vmatpush1.bf16.msra.mxu0 %v396
    %542 = vmatprep.subr.bf16.mxu0 0
    %543 = vmatpush1.bf16.msra.mxu0 %v397
    %544 = vmatprep.subr.bf16.mxu0 0
    %545 = vmatpush1.bf16.msra.mxu0 %v398
    %546 = vmatprep.subr.bf16.mxu0 0
    %547 = vmatpush1.bf16.msra.mxu0 %v399
    %548 = vmatprep.subr.bf16.mxu0 0
    %549 = vmatpush1.bf16.msra.mxu0 %v400
    %550 = vmatprep.subr.bf16.mxu0 0
    %551 = vmatpush1.bf16.msra.mxu0 %v401
    %552 = vmatprep.subr.bf16.mxu0 0
    %553 = vmatpush1.bf16.msra.mxu0 %v402
    %554 = vmatprep.subr.bf16.mxu0 0
    %555 = vmatpush1.bf16.msra.mxu0 %v403
    %556 = vmatprep.subr.bf16.mxu0 0
    %557 = vmatpush1.bf16.msra.mxu0 %v404
    %558 = vmatprep.subr.bf16.mxu0 0
    %559 = vmatpush1.bf16.msra.mxu0 %v405
    %560 = vmatprep.subr.bf16.mxu0 0
    %561 = vmatpush1.bf16.msra.mxu0 %v406
    %562 = vmatprep.subr.bf16.mxu0 0
    %563 = vmatpush1.bf16.msra.mxu0 %v407
    %564 = vmatprep.subr.bf16.mxu0 0
    %565 = vmatpush1.bf16.msra.mxu0 %v408
    %566 = vmatprep.subr.bf16.mxu0 0
    %567 = vmatpush1.bf16.msra.mxu0 %v409
    %568 = vmatprep.subr.bf16.mxu0 0
    %569 = vmatpush1.bf16.msra.mxu0 %v410
    %570 = vmatprep.subr.bf16.mxu0 0
    %571 = vmatpush1.bf16.msra.mxu0 %v411
    %572 = vmatprep.mubr.bf16.mxu0 %v75
    %573 = vmatmul.mubr.bf16.gmra.mrb[0].mxu0 %v74
    %v574 = vpop.f32.mrb[0].mxu0
    %v575 = vadd.f32 %v535, %v574
    %v576 = vpop.f32.mrb[0].mxu0
    %v577 = vpop.f32.mrb[0].mxu0
    %v578 = vpop.f32.mrb[0].mxu0
    %579 = vdwg.mxu0
    %v580 = vmul.f32 %v575, %v575
    %vm581 = vcmask 254976
    %v582 = vsel %vm581, %v580, 0.0
    %583 = vadd.xlane.f32.xlu0 %v582
    %v584 = vpop.xlane.xlu0 %583
    %v585 = vrsqrt.pop %v584
    %v586 = vld [vmem:[#allocation2] sm:$0x1]
    %v587 = vmul.f32 %v586, 1.442695
    %v588 = vpow.pop %v587
    %v590 = vlaneseq
    %v591 = vshrl.u32 %v590, 7
    %v592 = vsub.s32 0, %v591
    %v593 = vrot.slane %v588, %v592
    %v595 = vmul.f32 %v585, %v593
    %597 = vset.pattern.permute.xlu0 0
    %598 = vperm.xlu0 %597, %v595
    %v599 = vpop.permute.xlu0 %598
    %v601 = vmul.f32 %v575, %v599
    %v602 = vpack.c.bf16 %v601, %v601
    %v603 = vld [vmem:[%s3] sm:$0xf]
    %v604 = vld [vmem:[%s3 + $0x4] sm:$0xf]
    %v605 = vld [vmem:[%s3 + $0x8] sm:$0xf]
    %v606 = vld [vmem:[%s3 + $0xc] sm:$0xf]
    %v611 = vunpack.c.l.b16 %v603
    %v612 = vunpack.c.l.b16 %v604
    %v613 = vunpack.c.l.b16 %v605
    %v614 = vunpack.c.l.b16 %v606
    %v615 = vpack.c.b16 %v612, %v611
    %v616 = vpack.c.b16 %v614, %v613
    %vm619 = vcmask 261120
    %v621 = vsel %vm619, %v602, 0
    %623 = vmatprep.subr.bf16.mxu0 0
    %624 = vmatpush1.bf16.msra.mxu0 %v615
    %625 = vmatprep.subr.bf16.mxu0 0
    %626 = vmatpush1.bf16.msra.mxu0 %v616
    %627 = vmatprep.subr.bf16.mxu0 0
    %628 = vmatpush1.bf16.msra.mxu0 0
    %629 = vmatprep.subr.bf16.mxu0 0
    %630 = vmatpush1.bf16.msra.mxu0 0
    %631 = vmatprep.subr.bf16.mxu0 0
    %632 = vmatpush1.bf16.msra.mxu0 0
    %633 = vmatprep.subr.bf16.mxu0 0
    %634 = vmatpush1.bf16.msra.mxu0 0
    %635 = vmatprep.subr.bf16.mxu0 0
    %636 = vmatpush1.bf16.msra.mxu0 0
    %637 = vmatprep.subr.bf16.mxu0 0
    %638 = vmatpush1.bf16.msra.mxu0 0
    %639 = vmatprep.subr.bf16.mxu0 0
    %640 = vmatpush1.bf16.msra.mxu0 0
    %641 = vmatprep.subr.bf16.mxu0 0
    %642 = vmatpush1.bf16.msra.mxu0 0
    %643 = vmatprep.subr.bf16.mxu0 0
    %644 = vmatpush1.bf16.msra.mxu0 0
    %645 = vmatprep.subr.bf16.mxu0 0
    %646 = vmatpush1.bf16.msra.mxu0 0
    %647 = vmatprep.subr.bf16.mxu0 0
    %648 = vmatpush1.bf16.msra.mxu0 0
    %649 = vmatprep.subr.bf16.mxu0 0
    %650 = vmatpush1.bf16.msra.mxu0 0
    %651 = vmatprep.subr.bf16.mxu0 0
    %652 = vmatpush1.bf16.msra.mxu0 0
    %653 = vmatprep.subr.bf16.mxu0 0
    %654 = vmatpush1.bf16.msra.mxu0 0
    %655 = vmatprep.mubr.bf16.mxu0 0
    %656 = vmatmul.mubr.bf16.gmra.mrb[0].mxu0 %v621
    %v657 = vpop.f32.mrb[0].mxu0
    %v658 = vadd.f32 0.0, %v657
    %v659 = vpop.f32.mrb[0].mxu0
    %v660 = vpop.f32.mrb[0].mxu0
    %v661 = vpop.f32.mrb[0].mxu0
    %662 = vdwg.mxu0
    %663 = vst [vmem:[#allocation6] sm:$0x3] %v658
    // Predicated region
    $region22: #{a_call__.1} parent=1 // pred_check
      _
    $region23: #{a_call__.1} parent=1 // pred_check_branch
      %665 = sbr.rel (0) target = $region25
    $region24: #{a_call__.1} parent=1 // pred_region
      %s667 = ssub.s32 32, 32
      %668 = vsyncadd [#allocation5], %s667
      %s670 = sshll.u32 [#allocation6], 4
      %s671 = int_to_ptr.vmem [resolvable:$true] %s670
      %673 = dma.vmem_to_hbm [thread:$0]  %s671, 32, %s4, [#allocation5]
    $region25: #{a_call__.1} parent=1 // pred_fallthru
      _
    // Predicated region
    $region26: #{a_call__.1} parent=1 // pred_check
      _
    $region27: #{a_call__.1} parent=1 // pred_check_branch
      %675 = sbr.rel (0) target = $region29
    $region28: #{a_call__.1} parent=1 // pred_region
      %676 = dma.done [#allocation5], 32
    $region29: #{a_call__.1} parent=1 // pred_fallthru
      _
    %677 = vsyncpa [#allocation4], 1
    %678 = vsyncpa [#allocation5], 1

</llo_original>
